<compile_context>
chip_gen: v7x
topology: tpu7x:2x2x1
jax: 0.10.0
libtpu: 0.0.40
codegen_flags: <defaults>
</compile_context>

<pallas_src>
import functools

import jax
import jax.numpy as jnp
import numpy as np
from jax import lax
from jax.experimental import pallas as pl
from jax.experimental.pallas import tpu as pltpu

R1 = 1e-4
R2 = 1e-4
EPS = 1e-9


def _eye(n, dtype=jnp.float32):
    row = lax.broadcasted_iota(jnp.int32, (n, n), 0)
    col = lax.broadcasted_iota(jnp.int32, (n, n), 1)
    return (row == col).astype(dtype)


def _vmem_capacity_bytes():
    try:
        return int(pltpu.get_tpu_info().vmem_capacity_bytes)
    except Exception:
        return 64 * 1024 * 1024          # conservative (v7x per-core figure)


def _input_vmem_budget_bytes():
    # Keep the streamed input tiles well under the scoped-VMEM defaults so
    # double buffering + resident (O,O) accumulators always fit on v5e/v6e
    # (128 MiB physical) and v7x (64 MiB physical).
    return min(_vmem_capacity_bytes() // 4, 16 * 1024 * 1024)


def _num_parallel_splits():
    # v7x has two TensorCores per chip; a leading "parallel" grid axis lets the
    # covariance pass use both.  v5e/v6e have a single TC -> no split.
    try:
        kind = jax.devices()[0].device_kind.lower()
    except Exception:
        return 1
    return 2 if "v7" in kind else 1


# --------------------------------------------------------------------------
# Kernel 1: single-pass joint Gram + column sums.
# Grid = (n_split, nm).  Samples live on sublanes, the concatenated feature
# axis (o1+o2) on lanes.  Output block index is constant along the inner
# (sample) axis -> the (O,O) Gram and (1,O) sum stay resident in VMEM and act
# as accumulators; partial results per split are combined in the wrapper.
# --------------------------------------------------------------------------
def joint_gram_kernel(m_total, tm, need_mask, h1_ref, h2_ref, g_ref, s_ref):
    i = pl.program_id(1)

    @pl.when(i == 0)
    def _():
        g_ref[...] = jnp.zeros_like(g_ref)
        s_ref[...] = jnp.zeros_like(s_ref)

    # Joint tile [H1 | H2] in the input's native dtype (bf16 feeds the MXU
    # single-pass; accumulation stays f32 via preferred_element_type).
    h = jnp.concatenate([h1_ref[...], h2_ref[...]], axis=-1)      # (tm, O)

    if need_mask:
        blk = pl.program_id(0) * pl.num_programs(1) + i
        row0 = blk * tm
        rows = row0 + lax.broadcasted_iota(jnp.int32, (h.shape[0], 1), 0)
        h = jnp.where(rows < m_total, h, jnp.zeros_like(h))

    # Contract the sample axis of both operands directly on the MXU
    # (no materialized transposes).
    g_ref[...] += lax.dot_general(h, h, (((0,), (0,)), ((), ())),
                                  preferred_element_type=jnp.float32)
    s_ref[...] += jnp.sum(h.astype(jnp.float32), axis=0, keepdims=True)


def pallas_covariances(H1, H2, r1=R1, r2=R2, tm=None):
    m, o1 = H1.shape
    m2, o2 = H2.shape
    assert m == m2, "H1 / H2 must have the same number of samples"
    O = o1 + o2
    itemsize = max(H1.dtype.itemsize, H2.dtype.itemsize)

    # Sample-tile size from the VMEM budget: 2 views x 2 pipeline buffers.
    if tm is None:
        tm = _input_vmem_budget_bytes() // (2 * 2 * O * itemsize)
    if tm >= m:
        tm = m                                    # single full-extent block
    else:
        tm = max(8, (int(tm) // 8) * 8)           # sublane-aligned

    total_blocks = pl.cdiv(m, tm)
    n_split = _num_parallel_splits()
    if total_blocks < 2 * n_split or total_blocks % n_split != 0:
        n_split = 1
    nm = total_blocks // n_split
    need_mask = (m % tm) != 0

    in_bytes = 2 * 2 * tm * O * itemsize          # double-buffered inputs
    out_bytes = 2 * 2 * (O * O + O) * 4           # resident outputs
    vmem_limit = min(int(in_bytes + out_bytes + (4 << 20)),
                     int(_vmem_capacity_bytes() * 0.9))

    kernel = functools.partial(joint_gram_kernel, m, tm, need_mask)
    g_parts, s_parts = pl.pallas_call(
        kernel,
        out_shape=(jax.ShapeDtypeStruct((n_split, O, O), jnp.float32),
                   jax.ShapeDtypeStruct((n_split, 1, O), jnp.float32)),
        grid_spec=pltpu.PrefetchScalarGridSpec(
            num_scalar_prefetch=0,
            grid=(n_split, nm),
            in_specs=[
                pl.BlockSpec((tm, o1), lambda s, i: (s * nm + i, 0)),
                pl.BlockSpec((tm, o2), lambda s, i: (s * nm + i, 0)),
            ],
            out_specs=[
                pl.BlockSpec((None, O, O), lambda s, i: (s, 0, 0)),
                pl.BlockSpec((None, 1, O), lambda s, i: (s, 0, 0)),
            ],
        ),
        compiler_params=pltpu.CompilerParams(
            dimension_semantics=("parallel", "arbitrary"),
            vmem_limit_bytes=vmem_limit),
    )(H1, H2)

    # Tiny (O,O) epilogue: combine per-core partials, mean-correct, ridge,
    # slice the three covariance blocks.
    G = jnp.sum(g_parts, axis=0)                  # (O, O) uncentered Gram
    s = jnp.sum(s_parts, axis=0)                  # (1, O) column sums
    mf = jnp.float32(m)
    Sigma = (G - (s.T @ s) / mf) / (mf - 1.0)
    ridge = jnp.concatenate([jnp.full((o1,), r1, jnp.float32),
                             jnp.full((o2,), r2, jnp.float32)])
    Sigma = Sigma + jnp.diag(ridge)
    S11 = Sigma[:o1, :o1]
    S22 = Sigma[o1:, o1:]
    S12 = Sigma[:o1, o1:]
    return S11, S22, S12


# --------------------------------------------------------------------------
# Kernel 2: whitening + Tval + trace_TT, fully fused in one launch.
# All contractions via dot_general dimension numbers (no explicit transposes).
# --------------------------------------------------------------------------
def tval_kernel(eps, ridge, v1_ref, d1_ref, v2_ref, d2_ref, s12_ref, tt_ref):
    d1 = d1_ref[...]                              # (1, o1) eigenvalues
    d2 = d2_ref[...]                              # (1, o2)
    # torch drops eigenpairs with D <= eps; zeroing their D^-1/2 weight in
    # V diag(D^-1/2) V^T is mathematically identical.
    inv1 = jnp.where(d1 > eps, lax.rsqrt(jnp.where(d1 > eps, d1, 1.0)), 0.0)
    inv2 = jnp.where(d2 > eps, lax.rsqrt(jnp.where(d2 > eps, d2, 1.0)), 0.0)
    v1 = v1_ref[...]
    v2 = v2_ref[...]
    dn_cols = (((1,), (1,)), ((), ()))            # A @ B^T (contract cols)
    dn_rows = (((0,), (0,)), ((), ()))            # A^T @ B (contract rows)
    rt1 = lax.dot_general(v1 * inv1, v1, dn_cols,
                          preferred_element_type=jnp.float32)
    rt2 = lax.dot_general(v2 * inv2, v2, dn_cols,
                          preferred_element_type=jnp.float32)
    t = jnp.dot(jnp.dot(rt1, s12_ref[...], preferred_element_type=jnp.float32),
                rt2, preferred_element_type=jnp.float32)
    tt = lax.dot_general(t, t, dn_rows, preferred_element_type=jnp.float32)
    tt_ref[...] = tt + ridge * _eye(tt_ref.shape[0])


def pallas_trace_tt(V1, D1, V2, D2, S12, ridge, eps=EPS):
    o1 = V1.shape[0]
    o2 = V2.shape[0]
    d1 = D1.reshape(1, o1).astype(jnp.float32)
    d2 = D2.reshape(1, o2).astype(jnp.float32)
    kernel = functools.partial(tval_kernel, float(eps), float(ridge))
    return pl.pallas_call(
        kernel,
        out_shape=jax.ShapeDtypeStruct((o2, o2), jnp.float32),
        grid=(1,),
        in_specs=[
            pl.BlockSpec((o1, o1), lambda i: (0, 0)),
            pl.BlockSpec((1, o1), lambda i: (0, 0)),
            pl.BlockSpec((o2, o2), lambda i: (0, 0)),
            pl.BlockSpec((1, o2), lambda i: (0, 0)),
            pl.BlockSpec((o1, o2), lambda i: (0, 0)),
        ],
        out_specs=pl.BlockSpec((o2, o2), lambda i: (0, 0)),
    )(V1.astype(jnp.float32), d1, V2.astype(jnp.float32), d2,
      S12.astype(jnp.float32))


# --------------------------------------------------------------------------
# Full DCCA loss (mirrors DCCALoss.forward; H1, H2 are (m, o) as in torch).
# --------------------------------------------------------------------------
def dcca_loss(H1, H2, use_all_singular_values=False, outdim_size=1,
              cov_tile=None):
    S11, S22, S12 = pallas_covariances(H1, H2, tm=cov_tile)

    # TODO(synk): symmetric eigendecomposition has no Pallas/Mosaic primitive;
    # the o x o eigh calls run as regular XLA ops between the two kernels.
    D1, V1 = jnp.linalg.eigh(S11)
    D2, V2 = jnp.linalg.eigh(S22)

    ridge = 0.0 if use_all_singular_values else R1
    trace_tt = pallas_trace_tt(V1, D1, V2, D2, S12, ridge)

    if use_all_singular_values:
        # trace(elementwise sqrt(T^T T)) == sum of sqrt of the diagonal.
        corr = jnp.sum(jnp.sqrt(jnp.diagonal(trace_tt)))
    else:
        U, _ = jnp.linalg.eigh(trace_tt)
        U = jnp.where(U > EPS, U, jnp.full_like(U, EPS))
        topk = lax.top_k(U, outdim_size)[0]
        corr = jnp.sum(jnp.sqrt(topk))
    return -corr


# --------------------------------------------------------------------------
# Independent pure-JAX reference mirroring the torch code (for checking).
# --------------------------------------------------------------------------
def reference_dcca_loss(H1, H2, use_all_singular_values=False, outdim_size=1):
    hp = lax.Precision.HIGHEST
    H1t = jnp.asarray(H1, jnp.float32).T
    H2t = jnp.asarray(H2, jnp.float32).T
    o1, m = H1t.shape
    o2 = H2t.shape[0]
    H1bar = H1t - jnp.mean(H1t, axis=1, keepdims=True)
    H2bar = H2t - jnp.mean(H2t, axis=1, keepdims=True)
    S12 = jnp.matmul(H1bar, H2bar.T, precision=hp) / (m - 1)
    S11 = jnp.matmul(H1bar, H1bar.T, precision=hp) / (m - 1) + R1 * jnp.eye(o1)
    S22 = jnp.matmul(H2bar, H2bar.T, precision=hp) / (m - 1) + R2 * jnp.eye(o2)
    D1, V1 = jnp.linalg.eigh(S11)
    D2, V2 = jnp.linalg.eigh(S22)
    inv1 = jnp.where(D1 > EPS, 1.0 / jnp.sqrt(jnp.where(D1 > EPS, D1, 1.0)), 0.0)
    inv2 = jnp.where(D2 > EPS, 1.0 / jnp.sqrt(jnp.where(D2 > EPS, D2, 1.0)), 0.0)
    Rt1 = jnp.matmul(V1 * inv1[None, :], V1.T, precision=hp)
    Rt2 = jnp.matmul(V2 * inv2[None, :], V2.T, precision=hp)
    T = jnp.matmul(jnp.matmul(Rt1, S12, precision=hp), Rt2, precision=hp)
    if use_all_singular_values:
        corr = jnp.trace(jnp.sqrt(jnp.matmul(T.T, T, precision=hp)))
    else:
        TT = jnp.matmul(T.T, T, precision=hp) + R1 * jnp.eye(o2)
        U, _ = jnp.linalg.eigh(TT)
        U = jnp.where(U > EPS, U, jnp.full_like(U, EPS))
        topk = lax.top_k(U, outdim_size)[0]
        corr = jnp.sum(jnp.sqrt(topk))
    return -corr


if __name__ == "__main__":
    # Deterministic example: m=1024 samples, two 32-dim views that are
    # genuinely correlated so the top canonical correlation is well-defined.
    m, o1, o2 = 1024, 32, 32
    keys = jax.random.split(jax.random.PRNGKey(0), 3)
    H1 = jax.random.normal(keys[0], (m, o1), dtype=jnp.float32)
    mix = 0.2 * jax.random.normal(keys[1], (o1, o2), dtype=jnp.float32)
    H2 = jnp.dot(H1, mix) + 0.5 * jax.random.normal(keys[2], (m, o2),
                                                    dtype=jnp.float32)

    ref = jax.block_until_ready(reference_dcca_loss(H1, H2))

    # Forced small tile (4 sample tiles) exercises the resident-accumulator
    # grid loop of the covariance kernel.
    loss_tiled = jax.block_until_ready(dcca_loss(H1, H2, cov_tile=256))
    # Auto (VMEM-budget-derived) tiling.
    loss_auto = jax.block_until_ready(dcca_loss(H1, H2))

    assert loss_tiled.shape == () and loss_auto.shape == ()
    assert bool(jnp.isfinite(loss_tiled)) and bool(jnp.isfinite(loss_auto))
    # Tolerance covers MXU f32-pass differences vs the HIGHEST-precision XLA
    # reference propagated through two eigendecompositions, plus the
    # single-pass (uncentered Gram + mean correction) formulation.
    np.testing.assert_allclose(np.asarray(loss_tiled), np.asarray(ref),
                               rtol=1e-2, atol=1e-2)
    np.testing.assert_allclose(np.asarray(loss_auto), np.asarray(ref),
                               rtol=1e-2, atol=1e-2)
    print("KERNEL_OK")
</pallas_src>

<mosaic_0001>
module attributes {stable_mosaic.version = 11 : i64} {
  func.func @joint_gram_kernel(%arg0: i32, %arg1: i32, %arg2: memref<256x32xf32, #tpu.memory_space<vmem>>, %arg3: memref<256x32xf32, #tpu.memory_space<vmem>>, %arg4: memref<1x64x64xf32, #tpu.memory_space<vmem>>, %arg5: memref<1x1x64xf32, #tpu.memory_space<vmem>>) attributes {dimension_semantics = [#tpu.dimension_semantics<parallel>, #tpu.dimension_semantics<arbitrary>], iteration_bounds = array<i64: 1, 4>, scalar_prefetch = 0 : i64, scratch_operands = 0 : i64, tpu.core_type = #tpu.core_type<tc>, window_params = [{transform_indices = @transform_0, window_bounds = array<i64: 256, 32>}, {transform_indices = @transform_1, window_bounds = array<i64: 256, 32>}, {transform_indices = @transform_2, window_bounds = array<i64: 1, 64, 64>}, {transform_indices = @transform_3, window_bounds = array<i64: 1, 1, 64>}]} {
    %c0_i32 = arith.constant 0 : i32
    %0 = arith.cmpi eq, %arg1, %c0_i32 : i32
    %1 = arith.extui %0 : i1 to i32
    %c0_i32_0 = arith.constant 0 : i32
    %2 = arith.cmpi ne, %1, %c0_i32_0 : i32
    scf.if %2 {
      %cst_17 = arith.constant 0.000000e+00 : f32
      %21 = vector.broadcast %cst_17 : f32 to vector<64x64xf32>
      %c0_18 = arith.constant 0 : index
      %c0_19 = arith.constant 0 : index
      %c0_20 = arith.constant 0 : index
      %22 = vector.load %arg4[%c0_18, %c0_19, %c0_20] : memref<1x64x64xf32, #tpu.memory_space<vmem>>, vector<1x64x64xf32>
      %23 = vector.shape_cast %22 : vector<1x64x64xf32> to vector<64x64xf32>
      %24 = vector.shape_cast %21 : vector<64x64xf32> to vector<1x64x64xf32>
      tpu.vector_store %arg4[%c0_18, %c0_19, %c0_20], %24 {strides = array<i32>} : memref<1x64x64xf32, #tpu.memory_space<vmem>>, vector<1x64x64xf32>,
      %cst_21 = arith.constant 0.000000e+00 : f32
      %25 = vector.broadcast %cst_21 : f32 to vector<1x64xf32>
      %c0_22 = arith.constant 0 : index
      %c0_23 = arith.constant 0 : index
      %c0_24 = arith.constant 0 : index
      %26 = vector.load %arg5[%c0_22, %c0_23, %c0_24] : memref<1x1x64xf32, #tpu.memory_space<vmem>>, vector<1x1x64xf32>
      %27 = vector.shape_cast %26 : vector<1x1x64xf32> to vector<1x64xf32>
      %28 = vector.shape_cast %25 : vector<1x64xf32> to vector<1x1x64xf32>
      tpu.vector_store %arg5[%c0_22, %c0_23, %c0_24], %28 {strides = array<i32>} : memref<1x1x64xf32, #tpu.memory_space<vmem>>, vector<1x1x64xf32>,
    } else {
    }
    %c0 = arith.constant 0 : index
    %c0_1 = arith.constant 0 : index
    %3 = vector.load %arg2[%c0, %c0_1] : memref<256x32xf32, #tpu.memory_space<vmem>>, vector<256x32xf32>
    %c0_2 = arith.constant 0 : index
    %c0_3 = arith.constant 0 : index
    %4 = vector.load %arg3[%c0_2, %c0_3] : memref<256x32xf32, #tpu.memory_space<vmem>>, vector<256x32xf32>
    %5 = tpu.concatenate %3, %4 in 1 : vector<256x32xf32>, vector<256x32xf32> -> vector<256x64xf32>
    %c0_4 = arith.constant 0 : index
    %c0_5 = arith.constant 0 : index
    %c0_6 = arith.constant 0 : index
    %6 = vector.load %arg4[%c0_4, %c0_5, %c0_6] : memref<1x64x64xf32, #tpu.memory_space<vmem>>, vector<1x64x64xf32>
    %7 = vector.shape_cast %6 : vector<1x64x64xf32> to vector<64x64xf32>
    %cst = arith.constant dense<0.000000e+00> : vector<64x64xf32>
    %8 = tpu.matmul %5, %5, %cst {dimension_numbers = #tpu.dot_dimension_numbers<[0], [0], [1], [1], [0, 1, 1, 1], [], []>} : vector<256x64xf32>, vector<256x64xf32>, vector<64x64xf32> -> vector<64x64xf32>
    %9 = arith.addf %7, %8 : vector<64x64xf32>
    %c0_7 = arith.constant 0 : index
    %c0_8 = arith.constant 0 : index
    %c0_9 = arith.constant 0 : index
    %10 = vector.load %arg4[%c0_7, %c0_8, %c0_9] : memref<1x64x64xf32, #tpu.memory_space<vmem>>, vector<1x64x64xf32>
    %11 = vector.shape_cast %10 : vector<1x64x64xf32> to vector<64x64xf32>
    %12 = vector.shape_cast %9 : vector<64x64xf32> to vector<1x64x64xf32>
    tpu.vector_store %arg4[%c0_7, %c0_8, %c0_9], %12 {strides = array<i32>} : memref<1x64x64xf32, #tpu.memory_space<vmem>>, vector<1x64x64xf32>,
    %c0_10 = arith.constant 0 : index
    %c0_11 = arith.constant 0 : index
    %c0_12 = arith.constant 0 : index
    %13 = vector.load %arg5[%c0_10, %c0_11, %c0_12] : memref<1x1x64xf32, #tpu.memory_space<vmem>>, vector<1x1x64xf32>
    %14 = vector.shape_cast %13 : vector<1x1x64xf32> to vector<1x64xf32>
    %cst_13 = arith.constant dense<0.000000e+00> : vector<64xf32>
    %15 = vector.multi_reduction <add>, %5, %cst_13 [0] : vector<256x64xf32> to vector<64xf32>
    %16 = vector.shape_cast %15 : vector<64xf32> to vector<1x64xf32>
    %17 = arith.addf %14, %16 : vector<1x64xf32>
    %c0_14 = arith.constant 0 : index
    %c0_15 = arith.constant 0 : index
    %c0_16 = arith.constant 0 : index
    %18 = vector.load %arg5[%c0_14, %c0_15, %c0_16] : memref<1x1x64xf32, #tpu.memory_space<vmem>>, vector<1x1x64xf32>
    %19 = vector.shape_cast %18 : vector<1x1x64xf32> to vector<1x64xf32>
    %20 = vector.shape_cast %17 : vector<1x64xf32> to vector<1x1x64xf32>
    tpu.vector_store %arg5[%c0_14, %c0_15, %c0_16], %20 {strides = array<i32>} : memref<1x1x64xf32, #tpu.memory_space<vmem>>, vector<1x1x64xf32>,
    return
  }
  func.func @transform_0(%arg0: i32, %arg1: i32) -> (i32, i32) {
    %c4_i32 = arith.constant 4 : i32
    %0 = arith.muli %arg0, %c4_i32 : i32
    %1 = arith.addi %0, %arg1 : i32
    %c0_i32 = arith.constant 0 : i32
    %c0_i32_0 = arith.constant 0 : i32
    return %1, %c0_i32 : i32, i32
  }
  func.func @transform_1(%arg0: i32, %arg1: i32) -> (i32, i32) {
    %c4_i32 = arith.constant 4 : i32
    %0 = arith.muli %arg0, %c4_i32 : i32
    %1 = arith.addi %0, %arg1 : i32
    %c0_i32 = arith.constant 0 : i32
    %c0_i32_0 = arith.constant 0 : i32
    return %1, %c0_i32 : i32, i32
  }
  func.func @transform_2(%arg0: i32, %arg1: i32) -> (i32, i32, i32) {
    %c0_i32 = arith.constant 0 : i32
    %c0_i32_0 = arith.constant 0 : i32
    %c0_i32_1 = arith.constant 0 : i32
    return %arg0, %c0_i32, %c0_i32_0 : i32, i32, i32
  }
  func.func @transform_3(%arg0: i32, %arg1: i32) -> (i32, i32, i32) {
    %c0_i32 = arith.constant 0 : i32
    %c0_i32_0 = arith.constant 0 : i32
    %c0_i32_1 = arith.constant 0 : i32
    return %arg0, %c0_i32, %c0_i32_0 : i32, i32, i32
  }
}

</mosaic_0001>

<llo_original>
// kernel: tpu_custom_call.1
$region0: #{tpu_custom_call.1}
  #allocation0 [shape = 'u32[]', space=smem, size = 0x4, offset = 0x4, fixed_abs, tag = 'smem constant byte address 0x4 - core index']
  #allocation1 [shape = 'u32[144,128]{1,0:T(1,128)}', space=vmem, size = 0x12000, scoped, tag = 'internal scratch']
  %s0 = inlined_call_operand.vmem [shape: f32[1024,32], index: 0, kind: input, shape index: {}]
  %s1 = inlined_call_operand.vmem [shape: f32[1024,32], index: 1, kind: input, shape index: {}]
  %s2 = inlined_call_operand.hbm [shape: f32[1,64,64], index: 2, kind: output, shape index: {0}]
  %s3 = inlined_call_operand.hbm [shape: f32[1,1,64], index: 3, kind: output, shape index: {1}]
  %4 = xla_tuple %s2, %s3
  %s5 = sld [smem:[#allocation0]]
  $region53: #{tpu_custom_call.1} parent=0
    _
  %s7 = ssub.s32 1, %s5
  %s8 = scalar_select 0, %s7, %s5
  $region1: #{tpu_custom_call.1} parent=0
    #allocation2 [shape = 'u8[32768]{0}', space=vmem, size = 0x8000, scoped, tag = 'output window, operand 0, single buffered']
    #allocation3 [shape = 's32[2]{0}', space=sflag, size = 0x8, scoped, tag = 'scoped memory for tpu_custom_call.1']
    #allocation4 [shape = 'u8[512]{0}', space=vmem, size = 0x400, scoped, tag = 'output window, operand 1, single buffered']
    #allocation5 [shape = 's32[1]{0}', space=sflag, size = 0x4, scoped, tag = 'scoped memory for tpu_custom_call.1']
    %9 = vsyncpa [#allocation3], 0
    %10 = vsyncpa [#allocation5], 0
    loop: start=0, step=1, limit=6
    $region2: #{tpu_custom_call.1} parent=1 // loop_pre_header
      _
    $region3: #{tpu_custom_call.1} parent=1 // loop_header
      %s12 = sphi 0, %s16
      %p13 = scmp.ge.s32.totalorder %s12, 6
      %s19 = sphi 0, %s31
      %s20 = sphi 0, %s27
      %s21 = sphi 0, %s19
      %s22 = sphi 0, %s20
      %s23 = sphi 0, %s21
      %s24 = sphi 0, %s22
      %s38 = sphi 0, %s40
      %s41 = sphi 0, %s38
      %s42 = sphi 0, %s41
      %s58 = sphi 0, %s42
      %s68 = sphi 0, %s70
      %s71 = sphi 0, %s68
      %s72 = sphi 0, %s71
      %s88 = sphi 0, %s72
      %s94 = sphi 0, %s96
      %s97 = sphi 0, %s94
      %s98 = sphi 0, %s97
      %s114 = sphi 0, %s98
      %s120 = sphi 0, %s122
      %s123 = sphi 0, %s120
      %s124 = sphi 0, %s123
      %s140 = sphi 0, %s124
    $region4: #{tpu_custom_call.1} parent=1 // loop_header_branch
      %15 = sbr.rel (%p13) target = $region8
    $region5: #{tpu_custom_call.1} parent=1 // loop_body
      %s17 = ssub.s32 %s12, 1
      %s18 = ssub.s32 %s12, 2
      %s25 = sadd.s32 1, %s20
      %p26 = scmp.ge.s32.totalorder %s25, 4
      %s27 = scalar_select %p26, 0, %s25
      %s28 = sadd.s32 1, %s19
      %s29 = scalar_select %p26, %s28, %s19
      %p30 = scmp.ge.s32.totalorder %s29, 1
      %s31 = scalar_select %p30, 0, %s29
      %s32 = smul.u32 %s19, 4
      %s33 = sadd.s32 %s32, %s20
      %s34 = smul.u32 %s31, 4
      %s35 = sadd.s32 %s34, %s27
      %s36 = ssub.s32 %s33, %s35
      %p37 = scmp.eq.s32.totalorder %s36, 0
      %s39 = sadd.s32 %s38, 1
      %s40 = scalar_select %p37, %s38, %s39
      %p43 = pneg %p37
      %p44 = scmp.eq.s32.totalorder %s12, 3
      %p45 = por %p43, %p44
      %p46 = scmp.ne.s32.totalorder %s38, %s41
      %p47 = scmp.eq.s32.totalorder %s12, 0
      %p48 = por %p46, %p47
      %p49 = scmp.ne.s32.totalorder %s38, %s41
      %p50 = scmp.eq.s32.totalorder %s17, 3
      %p51 = por %p49, %p50
      %p52 = scmp.ne.s32.totalorder %s41, %s42
      %p53 = scmp.eq.s32.totalorder %s17, 0
      %p54 = por %p52, %p53
      %p55 = scmp.ne.s32.totalorder %s41, %s42
      %p56 = scmp.eq.s32.totalorder %s18, 3
      %p57 = por %p55, %p56
      %p59 = scmp.ne.s32.totalorder %s42, %s58
      %p60 = scmp.eq.s32.totalorder %s18, 0
      %p61 = por %p59, %p60
      %s62 = smul.u32 %s19, 4
      %s63 = sadd.s32 %s62, %s20
      %s64 = smul.u32 %s31, 4
      %s65 = sadd.s32 %s64, %s27
      %s66 = ssub.s32 %s63, %s65
      %p67 = scmp.eq.s32.totalorder %s66, 0
      %s69 = sadd.s32 %s68, 1
      %s70 = scalar_select %p67, %s68, %s69
      %p73 = pneg %p67
      %p74 = scmp.eq.s32.totalorder %s12, 3
      %p75 = por %p73, %p74
      %p76 = scmp.ne.s32.totalorder %s68, %s71
      %p77 = scmp.eq.s32.totalorder %s12, 0
      %p78 = por %p76, %p77
      %p79 = scmp.ne.s32.totalorder %s68, %s71
      %p80 = scmp.eq.s32.totalorder %s17, 3
      %p81 = por %p79, %p80
      %p82 = scmp.ne.s32.totalorder %s71, %s72
      %p83 = scmp.eq.s32.totalorder %s17, 0
      %p84 = por %p82, %p83
      %p85 = scmp.ne.s32.totalorder %s71, %s72
      %p86 = scmp.eq.s32.totalorder %s18, 3
      %p87 = por %p85, %p86
      %p89 = scmp.ne.s32.totalorder %s72, %s88
      %p90 = scmp.eq.s32.totalorder %s18, 0
      %p91 = por %p89, %p90
      %s92 = ssub.s32 %s19, %s31
      %p93 = scmp.eq.s32.totalorder %s92, 0
      %s95 = sadd.s32 %s94, 1
      %s96 = scalar_select %p93, %s94, %s95
      %p99 = pneg %p93
      %p100 = scmp.eq.s32.totalorder %s12, 3
      %p101 = por %p99, %p100
      %p102 = scmp.ne.s32.totalorder %s94, %s97
      %p103 = scmp.eq.s32.totalorder %s12, 0
      %p104 = por %p102, %p103
      %p105 = scmp.ne.s32.totalorder %s94, %s97
      %p106 = scmp.eq.s32.totalorder %s17, 3
      %p107 = por %p105, %p106
      %p108 = scmp.ne.s32.totalorder %s97, %s98
      %p109 = scmp.eq.s32.totalorder %s17, 0
      %p110 = por %p108, %p109
      %p111 = scmp.ne.s32.totalorder %s97, %s98
      %p112 = scmp.eq.s32.totalorder %s18, 3
      %p113 = por %p111, %p112
      %p115 = scmp.ne.s32.totalorder %s98, %s114
      %p116 = scmp.eq.s32.totalorder %s18, 0
      %p117 = por %p115, %p116
      %s118 = ssub.s32 %s19, %s31
      %p119 = scmp.eq.s32.totalorder %s118, 0
      %s121 = sadd.s32 %s120, 1
      %s122 = scalar_select %p119, %s120, %s121
      %p125 = pneg %p119
      %p126 = scmp.eq.s32.totalorder %s12, 3
      %p127 = por %p125, %p126
      %p128 = scmp.ne.s32.totalorder %s120, %s123
      %p129 = scmp.eq.s32.totalorder %s12, 0
      %p130 = por %p128, %p129
      %p131 = scmp.ne.s32.totalorder %s120, %s123
      %p132 = scmp.eq.s32.totalorder %s17, 3
      %p133 = por %p131, %p132
      %p134 = scmp.ne.s32.totalorder %s123, %s124
      %p135 = scmp.eq.s32.totalorder %s17, 0
      %p136 = por %p134, %p135
      %p137 = scmp.ne.s32.totalorder %s123, %s124
      %p138 = scmp.eq.s32.totalorder %s18, 3
      %p139 = por %p137, %p138
      %p141 = scmp.ne.s32.totalorder %s124, %s140
      %p142 = scmp.eq.s32.totalorder %s18, 0
      %p143 = por %p141, %p142
      %p144 = scmp.le.s32.totalorder 1, %s12
      %p145 = scmp.lt.s32.totalorder %s12, 5
      %p146 = pnand %p144, %p145
      %p147 = pneg %p146
      // Predicated region
      $region9: #{tpu_custom_call.1} parent=5 // pred_check
        _
      $region10: #{tpu_custom_call.1} parent=5 // pred_check_branch
        %149 = sbr.rel (%p146) target = $region12
      $region11: #{tpu_custom_call.1} parent=5 // pred_region
        %s150 = ssub.s32 %s12, 1
      $region12: #{tpu_custom_call.1} parent=5 // pred_fallthru
        _
      %p151 = scmp.lt.s32.totalorder %s12, 4
      // Predicated region
      $region13: #{tpu_custom_call.1} parent=5 // pred_check
        %p152 = pneg %p151
      $region14: #{tpu_custom_call.1} parent=5 // pred_check_branch
        %154 = sbr.rel (%p152) target = $region16
      $region15: #{tpu_custom_call.1} parent=5 // pred_region
        // Predicated region
        $region17: #{tpu_custom_call.1} parent=15 // pred_check
          %p155 = pneg %p48
        $region18: #{tpu_custom_call.1} parent=15 // pred_check_branch
          %157 = sbr.rel (%p155) target = $region20
        $region19: #{tpu_custom_call.1} parent=15 // pred_region
          %s158 = smul.u32 %s19, 4
          %s159 = sadd.s32 %s158, %s20
          %s160 = smul.u32 32, %s159
          %p161 = scmp.lt.s32.totalorder %s160, 127
          %s162 = scalar_select %p161, %s160, 127
          %s163 = smul.addr %s162, 8
          %s164 = scalar_lea.vmem %s0, %s163
          %s165 = smul.u32 %s19, 4
          %s166 = sadd.s32 %s165, %s20
          %s167 = smul.u32 32, %s166
        $region20: #{tpu_custom_call.1} parent=15 // pred_fallthru
          _
        // Predicated region
        $region21: #{tpu_custom_call.1} parent=15 // pred_check
          %p168 = pneg %p78
        $region22: #{tpu_custom_call.1} parent=15 // pred_check_branch
          %170 = sbr.rel (%p168) target = $region24
        $region23: #{tpu_custom_call.1} parent=15 // pred_region
          %s171 = smul.u32 %s19, 4
          %s172 = sadd.s32 %s171, %s20
          %s173 = smul.u32 32, %s172
          %p174 = scmp.lt.s32.totalorder %s173, 127
          %s175 = scalar_select %p174, %s173, 127
          %s176 = smul.addr %s175, 8
          %s177 = scalar_lea.vmem %s1, %s176
          %s178 = smul.u32 %s19, 4
          %s179 = sadd.s32 %s178, %s20
          %s180 = smul.u32 32, %s179
        $region24: #{tpu_custom_call.1} parent=15 // pred_fallthru
          _
      $region16: #{tpu_custom_call.1} parent=5 // pred_fallthru
        _
      %p181 = scmp.le.s32.totalorder 1, %s12
      %p182 = scmp.lt.s32.totalorder %s12, 5
      %p183 = pnand %p181, %p182
      %p184 = pneg %p183
      // Predicated region
      $region25: #{tpu_custom_call.1} parent=5 // pred_check
        _
      $region26: #{tpu_custom_call.1} parent=5 // pred_check_branch
        %186 = sbr.rel (%p183) target = $region28
      $region27: #{tpu_custom_call.1} parent=5 // pred_region
        %s187 = ssub.s32 %s12, 1
        %s188 = smul.u32 %s21, 4
        %s189 = sadd.s32 %s188, %s22
        %s190 = smul.u32 32, %s189
        %p191 = scmp.lt.s32.totalorder %s190, 127
        %s192 = scalar_select %p191, %s190, 127
        %s193 = smul.addr %s192, 8
        %s194 = scalar_lea.vmem %s0, %s193
        %p195 = pneg %p54
        %p196 = pneg %p51
        %s197 = smul.u32 %s21, 4
        %s198 = sadd.s32 %s197, %s22
        %s199 = smul.u32 32, %s198
        %p200 = scmp.lt.s32.totalorder %s199, 127
        %s201 = scalar_select %p200, %s199, 127
        %s202 = smul.addr %s201, 8
        %s203 = scalar_lea.vmem %s1, %s202
        %p204 = pneg %p84
        %p205 = pneg %p81
        %p206 = pneg %p110
        %p207 = pneg %p107
        %p208 = pneg %p136
        %p209 = pneg %p133
        %s210 = smul.u32 %s21, 4
        %s211 = sadd.s32 %s210, %s22
        %s212 = smul.u32 32, %s211
        %p213 = scmp.lt.s32.totalorder %s212, 127
        %s214 = scalar_select %p213, %s212, 127
        %s215 = smul.addr %s214, 8
        %s216 = scalar_lea.vmem %s0, %s215
        %s217 = smul.u32 %s21, 4
        %s218 = sadd.s32 %s217, %s22
        %s219 = smul.u32 32, %s218
        %s220 = smul.u32 %s21, 4
        %s221 = sadd.s32 %s220, %s22
        %s222 = smul.u32 32, %s221
        %p223 = scmp.lt.s32.totalorder %s222, 127
        %s224 = scalar_select %p223, %s222, 127
        %s225 = smul.addr %s224, 8
        %s226 = scalar_lea.vmem %s1, %s225
        %s227 = smul.u32 %s21, 4
        %s228 = sadd.s32 %s227, %s22
        %s229 = smul.u32 32, %s228
        %p230 = scmp.eq.s32.totalorder %s22, 0
        // Predicated region
        $region29: #{tpu_custom_call.1} parent=27 // pred_check
          %p231 = pneg %p230
        $region30: #{tpu_custom_call.1} parent=27 // pred_check_branch
          %233 = sbr.rel (%p231) target = $region32
        $region31: #{tpu_custom_call.1} parent=27 // pred_region
          %vm234 = vcmask 523264
          %235 = vst.msk [vmem:[#allocation2] sm:$0xff] %vm234, 0.0
          %236 = vst.msk [vmem:[#allocation2 + $0x8] sm:$0xff] %vm234, 0.0
          %237 = vst.msk [vmem:[#allocation2 + $0x10] sm:$0xff] %vm234, 0.0
          %238 = vst.msk [vmem:[#allocation2 + $0x18] sm:$0xff] %vm234, 0.0
          %239 = vst.msk [vmem:[#allocation2 + $0x20] sm:$0xff] %vm234, 0.0
          %240 = vst.msk [vmem:[#allocation2 + $0x28] sm:$0xff] %vm234, 0.0
          %241 = vst.msk [vmem:[#allocation2 + $0x30] sm:$0xff] %vm234, 0.0
          %242 = vst.msk [vmem:[#allocation2 + $0x38] sm:$0xff] %vm234, 0.0
          %vm243 = vcmask 516096
          %244 = vst.msk [vmem:[#allocation4] sm:$0x1] %vm243, 0.0
        $region32: #{tpu_custom_call.1} parent=27 // pred_fallthru
          _
        %v245 = vld [vmem:[%s216] sm:$0xff]
        %v246 = vld [vmem:[%s216 + $0x8] sm:$0xff]
        %v247 = vld [vmem:[%s216 + $0x10] sm:$0xff]
        %v248 = vld [vmem:[%s216 + $0x18] sm:$0xff]
        %v249 = vld [vmem:[%s216 + $0x20] sm:$0xff]
        %v250 = vld [vmem:[%s216 + $0x28] sm:$0xff]
        %v251 = vld [vmem:[%s216 + $0x30] sm:$0xff]
        %v252 = vld [vmem:[%s216 + $0x38] sm:$0xff]
        %v253 = vld [vmem:[%s216 + $0x40] sm:$0xff]
        %v254 = vld [vmem:[%s216 + $0x48] sm:$0xff]
        %v255 = vld [vmem:[%s216 + $0x50] sm:$0xff]
        %v256 = vld [vmem:[%s216 + $0x58] sm:$0xff]
        %v257 = vld [vmem:[%s216 + $0x60] sm:$0xff]
        %v258 = vld [vmem:[%s216 + $0x68] sm:$0xff]
        %v259 = vld [vmem:[%s216 + $0x70] sm:$0xff]
        %v260 = vld [vmem:[%s216 + $0x78] sm:$0xff]
        %v261 = vld [vmem:[%s216 + $0x80] sm:$0xff]
        %v262 = vld [vmem:[%s216 + $0x88] sm:$0xff]
        %v263 = vld [vmem:[%s216 + $0x90] sm:$0xff]
        %v264 = vld [vmem:[%s216 + $0x98] sm:$0xff]
        %v265 = vld [vmem:[%s216 + $0xa0] sm:$0xff]
        %v266 = vld [vmem:[%s216 + $0xa8] sm:$0xff]
        %v267 = vld [vmem:[%s216 + $0xb0] sm:$0xff]
        %v268 = vld [vmem:[%s216 + $0xb8] sm:$0xff]
        %v269 = vld [vmem:[%s216 + $0xc0] sm:$0xff]
        %v270 = vld [vmem:[%s216 + $0xc8] sm:$0xff]
        %v271 = vld [vmem:[%s216 + $0xd0] sm:$0xff]
        %v272 = vld [vmem:[%s216 + $0xd8] sm:$0xff]
        %v273 = vld [vmem:[%s216 + $0xe0] sm:$0xff]
        %v274 = vld [vmem:[%s216 + $0xe8] sm:$0xff]
        %v275 = vld [vmem:[%s216 + $0xf0] sm:$0xff]
        %v276 = vld [vmem:[%s216 + $0xf8] sm:$0xff]
        %v277 = vld [vmem:[%s226] sm:$0xff]
        %v278 = vld [vmem:[%s226 + $0x8] sm:$0xff]
        %v279 = vld [vmem:[%s226 + $0x10] sm:$0xff]
        %v280 = vld [vmem:[%s226 + $0x18] sm:$0xff]
        %v281 = vld [vmem:[%s226 + $0x20] sm:$0xff]
        %v282 = vld [vmem:[%s226 + $0x28] sm:$0xff]
        %v283 = vld [vmem:[%s226 + $0x30] sm:$0xff]
        %v284 = vld [vmem:[%s226 + $0x38] sm:$0xff]
        %v285 = vld [vmem:[%s226 + $0x40] sm:$0xff]
        %v286 = vld [vmem:[%s226 + $0x48] sm:$0xff]
        %v287 = vld [vmem:[%s226 + $0x50] sm:$0xff]
        %v288 = vld [vmem:[%s226 + $0x58] sm:$0xff]
        %v289 = vld [vmem:[%s226 + $0x60] sm:$0xff]
        %v290 = vld [vmem:[%s226 + $0x68] sm:$0xff]
        %v291 = vld [vmem:[%s226 + $0x70] sm:$0xff]
        %v292 = vld [vmem:[%s226 + $0x78] sm:$0xff]
        %v293 = vld [vmem:[%s226 + $0x80] sm:$0xff]
        %v294 = vld [vmem:[%s226 + $0x88] sm:$0xff]
        %v295 = vld [vmem:[%s226 + $0x90] sm:$0xff]
        %v296 = vld [vmem:[%s226 + $0x98] sm:$0xff]
        %v297 = vld [vmem:[%s226 + $0xa0] sm:$0xff]
        %v298 = vld [vmem:[%s226 + $0xa8] sm:$0xff]
        %v299 = vld [vmem:[%s226 + $0xb0] sm:$0xff]
        %v300 = vld [vmem:[%s226 + $0xb8] sm:$0xff]
        %v301 = vld [vmem:[%s226 + $0xc0] sm:$0xff]
        %v302 = vld [vmem:[%s226 + $0xc8] sm:$0xff]
        %v303 = vld [vmem:[%s226 + $0xd0] sm:$0xff]
        %v304 = vld [vmem:[%s226 + $0xd8] sm:$0xff]
        %v305 = vld [vmem:[%s226 + $0xe0] sm:$0xff]
        %v306 = vld [vmem:[%s226 + $0xe8] sm:$0xff]
        %v307 = vld [vmem:[%s226 + $0xf0] sm:$0xff]
        %v308 = vld [vmem:[%s226 + $0xf8] sm:$0xff]
        %341 = vrot.lane.b32.xlu0 %v277, 32
        %v342 = vpop.permute.xlu0 %341
        %343 = vrot.lane.b32.xlu0 %v278, 32
        %v344 = vpop.permute.xlu0 %343
        %345 = vrot.lane.b32.xlu0 %v279, 32
        %v346 = vpop.permute.xlu0 %345
        %347 = vrot.lane.b32.xlu0 %v280, 32
        %v348 = vpop.permute.xlu0 %347
        %349 = vrot.lane.b32.xlu0 %v281, 32
        %v350 = vpop.permute.xlu0 %349
        %351 = vrot.lane.b32.xlu0 %v282, 32
        %v352 = vpop.permute.xlu0 %351
        %353 = vrot.lane.b32.xlu0 %v283, 32
        %v354 = vpop.permute.xlu0 %353
        %355 = vrot.lane.b32.xlu0 %v284, 32
        %v356 = vpop.permute.xlu0 %355
        %357 = vrot.lane.b32.xlu0 %v285, 32
        %v358 = vpop.permute.xlu0 %357
        %359 = vrot.lane.b32.xlu0 %v286, 32
        %v360 = vpop.permute.xlu0 %359
        %361 = vrot.lane.b32.xlu0 %v287, 32
        %v362 = vpop.permute.xlu0 %361
        %363 = vrot.lane.b32.xlu0 %v288, 32
        %v364 = vpop.permute.xlu0 %363
        %365 = vrot.lane.b32.xlu0 %v289, 32
        %v366 = vpop.permute.xlu0 %365
        %367 = vrot.lane.b32.xlu0 %v290, 32
        %v368 = vpop.permute.xlu0 %367
        %369 = vrot.lane.b32.xlu0 %v291, 32
        %v370 = vpop.permute.xlu0 %369
        %371 = vrot.lane.b32.xlu0 %v292, 32
        %v372 = vpop.permute.xlu0 %371
        %373 = vrot.lane.b32.xlu0 %v293, 32
        %v374 = vpop.permute.xlu0 %373
        %375 = vrot.lane.b32.xlu0 %v294, 32
        %v376 = vpop.permute.xlu0 %375
        %377 = vrot.lane.b32.xlu0 %v295, 32
        %v378 = vpop.permute.xlu0 %377
        %379 = vrot.lane.b32.xlu0 %v296, 32
        %v380 = vpop.permute.xlu0 %379
        %381 = vrot.lane.b32.xlu0 %v297, 32
        %v382 = vpop.permute.xlu0 %381
        %383 = vrot.lane.b32.xlu0 %v298, 32
        %v384 = vpop.permute.xlu0 %383
        %385 = vrot.lane.b32.xlu0 %v299, 32
        %v386 = vpop.permute.xlu0 %385
        %387 = vrot.lane.b32.xlu0 %v300, 32
        %v388 = vpop.permute.xlu0 %387
        %389 = vrot.lane.b32.xlu0 %v301, 32
        %v390 = vpop.permute.xlu0 %389
        %391 = vrot.lane.b32.xlu0 %v302, 32
        %v392 = vpop.permute.xlu0 %391
        %393 = vrot.lane.b32.xlu0 %v303, 32
        %v394 = vpop.permute.xlu0 %393
        %395 = vrot.lane.b32.xlu0 %v304, 32
        %v396 = vpop.permute.xlu0 %395
        %397 = vrot.lane.b32.xlu0 %v305, 32
        %v398 = vpop.permute.xlu0 %397
        %399 = vrot.lane.b32.xlu0 %v306, 32
        %v400 = vpop.permute.xlu0 %399
        %401 = vrot.lane.b32.xlu0 %v307, 32
        %v402 = vpop.permute.xlu0 %401
        %403 = vrot.lane.b32.xlu0 %v308, 32
        %v404 = vpop.permute.xlu0 %403
        %vm437 = vcmask 261120
        %v438 = vsel %vm437, %v245, %v342
        %v439 = vsel %vm437, %v246, %v344
        %v440 = vsel %vm437, %v247, %v346
        %v441 = vsel %vm437, %v248, %v348
        %v442 = vsel %vm437, %v249, %v350
        %v443 = vsel %vm437, %v250, %v352
        %v444 = vsel %vm437, %v251, %v354
        %v445 = vsel %vm437, %v252, %v356
        %v446 = vsel %vm437, %v253, %v358
        %v447 = vsel %vm437, %v254, %v360
        %v448 = vsel %vm437, %v255, %v362
        %v449 = vsel %vm437, %v256, %v364
        %v450 = vsel %vm437, %v257, %v366
        %v451 = vsel %vm437, %v258, %v368
        %v452 = vsel %vm437, %v259, %v370
        %v453 = vsel %vm437, %v260, %v372
        %v454 = vsel %vm437, %v261, %v374
        %v455 = vsel %vm437, %v262, %v376
        %v456 = vsel %vm437, %v263, %v378
        %v457 = vsel %vm437, %v264, %v380
        %v458 = vsel %vm437, %v265, %v382
        %v459 = vsel %vm437, %v266, %v384
        %v460 = vsel %vm437, %v267, %v386
        %v461 = vsel %vm437, %v268, %v388
        %v462 = vsel %vm437, %v269, %v390
        %v463 = vsel %vm437, %v270, %v392
        %v464 = vsel %vm437, %v271, %v394
        %v465 = vsel %vm437, %v272, %v396
        %v466 = vsel %vm437, %v273, %v398
        %v467 = vsel %vm437, %v274, %v400
        %v468 = vsel %vm437, %v275, %v402
        %v469 = vsel %vm437, %v276, %v404
        %v470 = vld [vmem:[#allocation2] sm:$0xff]
        %v471 = vld [vmem:[#allocation2 + $0x8] sm:$0xff]
        %v472 = vld [vmem:[#allocation2 + $0x10] sm:$0xff]
        %v473 = vld [vmem:[#allocation2 + $0x18] sm:$0xff]
        %v474 = vld [vmem:[#allocation2 + $0x20] sm:$0xff]
        %v475 = vld [vmem:[#allocation2 + $0x28] sm:$0xff]
        %v476 = vld [vmem:[#allocation2 + $0x30] sm:$0xff]
        %v477 = vld [vmem:[#allocation2 + $0x38] sm:$0xff]
        %478 = vxpose.xlu0.b32.start [1/16] %v438, 128
        %479 = vxpose.xlu0.b32.cont [2/16] %v439, 128
        %480 = vxpose.xlu0.b32.cont [3/16] %v440, 128
        %481 = vxpose.xlu0.b32.cont [4/16] %v441, 128
        %482 = vxpose.xlu0.b32.cont [5/16] %v442, 128
        %483 = vxpose.xlu0.b32.cont [6/16] %v443, 128
        %484 = vxpose.xlu0.b32.cont [7/16] %v444, 128
        %485 = vxpose.xlu0.b32.cont [8/16] %v445, 128
        %486 = vxpose.xlu0.b32.cont [9/16] %v446, 128
        %487 = vxpose.xlu0.b32.cont [10/16] %v447, 128
        %488 = vxpose.xlu0.b32.cont [11/16] %v448, 128
        %489 = vxpose.xlu0.b32.cont [12/16] %v449, 128
        %490 = vxpose.xlu0.b32.cont [13/16] %v450, 128
        %491 = vxpose.xlu0.b32.cont [14/16] %v451, 128
        %492 = vxpose.xlu0.b32.cont [15/16] %v452, 128
        %493 = vxpose.xlu0.b32.end [16/16] %v453, 128
        %v494 = vpop.trf.xlu0
        %v495 = vpop.trf.xlu0
        %v496 = vpop.trf.xlu0
        %v497 = vpop.trf.xlu0
        %v498 = vpop.trf.xlu0
        %v499 = vpop.trf.xlu0
        %v500 = vpop.trf.xlu0
        %v501 = vpop.trf.xlu0
        %v502 = vpop.trf.xlu0
        %v503 = vpop.trf.xlu0
        %v504 = vpop.trf.xlu0
        %v505 = vpop.trf.xlu0
        %v506 = vpop.trf.xlu0
        %v507 = vpop.trf.xlu0
        %v508 = vpop.trf.xlu0
        %v509 = vpop.trf.xlu0
        %510 = vxpose.xlu0.b32.start [1/16] %v454, 128
        %511 = vxpose.xlu0.b32.cont [2/16] %v455, 128
        %512 = vxpose.xlu0.b32.cont [3/16] %v456, 128
        %513 = vxpose.xlu0.b32.cont [4/16] %v457, 128
        %514 = vxpose.xlu0.b32.cont [5/16] %v458, 128
        %515 = vxpose.xlu0.b32.cont [6/16] %v459, 128
        %516 = vxpose.xlu0.b32.cont [7/16] %v460, 128
        %517 = vxpose.xlu0.b32.cont [8/16] %v461, 128
        %518 = vxpose.xlu0.b32.cont [9/16] %v462, 128
        %519 = vxpose.xlu0.b32.cont [10/16] %v463, 128
        %520 = vxpose.xlu0.b32.cont [11/16] %v464, 128
        %521 = vxpose.xlu0.b32.cont [12/16] %v465, 128
        %522 = vxpose.xlu0.b32.cont [13/16] %v466, 128
        %523 = vxpose.xlu0.b32.cont [14/16] %v467, 128
        %524 = vxpose.xlu0.b32.cont [15/16] %v468, 128
        %525 = vxpose.xlu0.b32.end [16/16] %v469, 128
        %v526 = vpop.trf.xlu0
        %v527 = vpop.trf.xlu0
        %v528 = vpop.trf.xlu0
        %v529 = vpop.trf.xlu0
        %v530 = vpop.trf.xlu0
        %v531 = vpop.trf.xlu0
        %v532 = vpop.trf.xlu0
        %v533 = vpop.trf.xlu0
        %v534 = vpop.trf.xlu0
        %v535 = vpop.trf.xlu0
        %v536 = vpop.trf.xlu0
        %v537 = vpop.trf.xlu0
        %v538 = vpop.trf.xlu0
        %v539 = vpop.trf.xlu0
        %v540 = vpop.trf.xlu0
        %v541 = vpop.trf.xlu0
        %542 = vmatprep.subr.mxu0 0.0
        %543 = vmatpush1.msra.mxu0 %v438
        %544 = vmatprep.subr.mxu0 0.0
        %545 = vmatpush1.msra.mxu0 %v439
        %546 = vmatprep.subr.mxu0 0.0
        %547 = vmatpush1.msra.mxu0 %v440
        %548 = vmatprep.subr.mxu0 0.0
        %549 = vmatpush1.msra.mxu0 %v441
        %550 = vmatprep.subr.mxu0 0.0
        %551 = vmatpush1.msra.mxu0 %v442
        %552 = vmatprep.subr.mxu0 0.0
        %553 = vmatpush1.msra.mxu0 %v443
        %554 = vmatprep.subr.mxu0 0.0
        %555 = vmatpush1.msra.mxu0 %v444
        %556 = vmatprep.subr.mxu0 0.0
        %557 = vmatpush1.msra.mxu0 %v445
        %558 = vmatprep.subr.mxu0 0.0
        %559 = vmatpush1.msra.mxu0 %v446
        %560 = vmatprep.subr.mxu0 0.0
        %561 = vmatpush1.msra.mxu0 %v447
        %562 = vmatprep.subr.mxu0 0.0
        %563 = vmatpush1.msra.mxu0 %v448
        %564 = vmatprep.subr.mxu0 0.0
        %565 = vmatpush1.msra.mxu0 %v449
        %566 = vmatprep.subr.mxu0 0.0
        %567 = vmatpush1.msra.mxu0 %v450
        %568 = vmatprep.subr.mxu0 0.0
        %569 = vmatpush1.msra.mxu0 %v451
        %570 = vmatprep.subr.mxu0 0.0
        %571 = vmatpush1.msra.mxu0 %v452
        %572 = vmatprep.subr.mxu0 0.0
        %573 = vmatpush1.msra.mxu0 %v453
        %574 = vmatprep.subr.mxu0 0.0
        %575 = vmatpush1.msra.mxu0 %v454
        %576 = vmatprep.subr.mxu0 0.0
        %577 = vmatpush1.msra.mxu0 %v455
        %578 = vmatprep.subr.mxu0 0.0
        %579 = vmatpush1.msra.mxu0 %v456
        %580 = vmatprep.subr.mxu0 0.0
        %581 = vmatpush1.msra.mxu0 %v457
        %582 = vmatprep.subr.mxu0 0.0
        %583 = vmatpush1.msra.mxu0 %v458
        %584 = vmatprep.subr.mxu0 0.0
        %585 = vmatpush1.msra.mxu0 %v459
        %586 = vmatprep.subr.mxu0 0.0
        %587 = vmatpush1.msra.mxu0 %v460
        %588 = vmatprep.subr.mxu0 0.0
        %589 = vmatpush1.msra.mxu0 %v461
        %590 = vmatprep.subr.mxu0 0.0
        %591 = vmatpush1.msra.mxu0 %v462
        %592 = vmatprep.subr.mxu0 0.0
        %593 = vmatpush1.msra.mxu0 %v463
        %594 = vmatprep.subr.mxu0 0.0
        %595 = vmatpush1.msra.mxu0 %v464
        %596 = vmatprep.subr.mxu0 0.0
        %597 = vmatpush1.msra.mxu0 %v465
        %598 = vmatprep.subr.mxu0 0.0
        %599 = vmatpush1.msra.mxu0 %v466
        %600 = vmatprep.subr.mxu0 0.0
        %601 = vmatpush1.msra.mxu0 %v467
        %602 = vmatprep.subr.mxu0 0.0
        %603 = vmatpush1.msra.mxu0 %v468
        %604 = vmatprep.subr.mxu0 0.0
        %605 = vmatpush1.msra.mxu0 %v469
        %606 = vmatprep.mubr.f32.mxu0 %v526
        %607 = vmatmul.mubr.f32.gmra.mrb[0].mxu0 %v494
        %v608 = vpop.f32.mrb[0].mxu0
        %v609 = vadd.f32 0.0, %v608
        %v610 = vpop.f32.mrb[0].mxu0
        %611 = vmatprep.mubr.f32.mxu0 %v527
        %612 = vmatmul.mubr.f32.gmra.mrb[0].mxu0 %v495
        %v613 = vpop.f32.mrb[0].mxu0
        %v614 = vadd.f32 0.0, %v613
        %v615 = vpop.f32.mrb[0].mxu0
        %616 = vmatprep.mubr.f32.mxu0 %v528
        %617 = vmatmul.mubr.f32.gmra.mrb[0].mxu0 %v496
        %v618 = vpop.f32.mrb[0].mxu0
        %v619 = vadd.f32 0.0, %v618
        %v620 = vpop.f32.mrb[0].mxu0
        %621 = vmatprep.mubr.f32.mxu0 %v529
        %622 = vmatmul.mubr.f32.gmra.mrb[0].mxu0 %v497
        %v623 = vpop.f32.mrb[0].mxu0
        %v624 = vadd.f32 0.0, %v623
        %v625 = vpop.f32.mrb[0].mxu0
        %626 = vmatprep.mubr.f32.mxu0 %v530
        %627 = vmatmul.mubr.f32.gmra.mrb[0].mxu0 %v498
        %v628 = vpop.f32.mrb[0].mxu0
        %v629 = vadd.f32 0.0, %v628
        %v630 = vpop.f32.mrb[0].mxu0
        %631 = vmatprep.mubr.f32.mxu0 %v531
        %632 = vmatmul.mubr.f32.gmra.mrb[0].mxu0 %v499
        %v633 = vpop.f32.mrb[0].mxu0
        %v634 = vadd.f32 0.0, %v633
        %v635 = vpop.f32.mrb[0].mxu0
        %636 = vmatprep.mubr.f32.mxu0 %v532
        %637 = vmatmul.mubr.f32.gmra.mrb[0].mxu0 %v500
        %v638 = vpop.f32.mrb[0].mxu0
        %v639 = vadd.f32 0.0, %v638
        %v640 = vpop.f32.mrb[0].mxu0
        %641 = vmatprep.mubr.f32.mxu0 %v533
        %642 = vmatmul.mubr.f32.gmra.mrb[0].mxu0 %v501
        %v643 = vpop.f32.mrb[0].mxu0
        %v644 = vadd.f32 0.0, %v643
        %v645 = vpop.f32.mrb[0].mxu0
        %646 = vdwg.mxu0
        %v647 = vadd.f32 %v470, %v609
        %v648 = vadd.f32 %v471, %v614
        %v649 = vadd.f32 %v472, %v619
        %v650 = vadd.f32 %v473, %v624
        %v651 = vadd.f32 %v474, %v629
        %v652 = vadd.f32 %v475, %v634
        %v653 = vadd.f32 %v476, %v639
        %v654 = vadd.f32 %v477, %v644
        %vm655 = vcmask 523264
        %656 = vst.msk [vmem:[#allocation2] sm:$0xff] %vm655, %v647
        %657 = vst.msk [vmem:[#allocation2 + $0x8] sm:$0xff] %vm655, %v648
        %658 = vst.msk [vmem:[#allocation2 + $0x10] sm:$0xff] %vm655, %v649
        %659 = vst.msk [vmem:[#allocation2 + $0x18] sm:$0xff] %vm655, %v650
        %660 = vst.msk [vmem:[#allocation2 + $0x20] sm:$0xff] %vm655, %v651
        %661 = vst.msk [vmem:[#allocation2 + $0x28] sm:$0xff] %vm655, %v652
        %662 = vst.msk [vmem:[#allocation2 + $0x30] sm:$0xff] %vm655, %v653
        %663 = vst.msk [vmem:[#allocation2 + $0x38] sm:$0xff] %vm655, %v654
        %v664 = vld [vmem:[#allocation4] sm:$0x1]
        %v665 = vsel %vm655, %v438, 0.0
        %v666 = vsel %vm655, %v439, 0.0
        %v667 = vadd.f32 %v665, %v666
        %v668 = vsel %vm655, %v440, 0.0
        %v669 = vadd.f32 %v667, %v668
        %v670 = vsel %vm655, %v441, 0.0
        %v671 = vadd.f32 %v669, %v670
        %v672 = vsel %vm655, %v442, 0.0
        %v673 = vadd.f32 %v671, %v672
        %v674 = vsel %vm655, %v443, 0.0
        %v675 = vadd.f32 %v673, %v674
        %v676 = vsel %vm655, %v444, 0.0
        %v677 = vadd.f32 %v675, %v676
        %v678 = vsel %vm655, %v445, 0.0
        %v679 = vadd.f32 %v677, %v678
        %v680 = vsel %vm655, %v446, 0.0
        %v681 = vadd.f32 %v679, %v680
        %v682 = vsel %vm655, %v447, 0.0
        %v683 = vadd.f32 %v681, %v682
        %v684 = vsel %vm655, %v448, 0.0
        %v685 = vadd.f32 %v683, %v684
        %v686 = vsel %vm655, %v449, 0.0
        %v687 = vadd.f32 %v685, %v686
        %v688 = vsel %vm655, %v450, 0.0
        %v689 = vadd.f32 %v687, %v688
        %v690 = vsel %vm655, %v451, 0.0
        %v691 = vadd.f32 %v689, %v690
        %v692 = vsel %vm655, %v452, 0.0
        %v693 = vadd.f32 %v691, %v692
        %v694 = vsel %vm655, %v453, 0.0
        %v695 = vadd.f32 %v693, %v694
        %v696 = vsel %vm655, %v454, 0.0
        %v697 = vadd.f32 %v695, %v696
        %v698 = vsel %vm655, %v455, 0.0
        %v699 = vadd.f32 %v697, %v698
        %v700 = vsel %vm655, %v456, 0.0
        %v701 = vadd.f32 %v699, %v700
        %v702 = vsel %vm655, %v457, 0.0
        %v703 = vadd.f32 %v701, %v702
        %v704 = vsel %vm655, %v458, 0.0
        %v705 = vadd.f32 %v703, %v704
        %v706 = vsel %vm655, %v459, 0.0
        %v707 = vadd.f32 %v705, %v706
        %v708 = vsel %vm655, %v460, 0.0
        %v709 = vadd.f32 %v707, %v708
        %v710 = vsel %vm655, %v461, 0.0
        %v711 = vadd.f32 %v709, %v710
        %v712 = vsel %vm655, %v462, 0.0
        %v713 = vadd.f32 %v711, %v712
        %v714 = vsel %vm655, %v463, 0.0
        %v715 = vadd.f32 %v713, %v714
        %v716 = vsel %vm655, %v464, 0.0
        %v717 = vadd.f32 %v715, %v716
        %v718 = vsel %vm655, %v465, 0.0
        %v719 = vadd.f32 %v717, %v718
        %v720 = vsel %vm655, %v466, 0.0
        %v721 = vadd.f32 %v719, %v720
        %v722 = vsel %vm655, %v467, 0.0
        %v723 = vadd.f32 %v721, %v722
        %v724 = vsel %vm655, %v468, 0.0
        %v725 = vadd.f32 %v723, %v724
        %v726 = vsel %vm655, %v469, 0.0
        %v727 = vadd.f32 %v725, %v726
        %v728 = vrot.slane %v727, 4
        %v729 = vadd.f32 %v727, %v728
        %v730 = vrot.slane %v729, 2
        %v731 = vadd.f32 %v729, %v730
        %v732 = vrot.slane %v731, 1
        %v733 = vadd.f32 %v731, %v732
        %v734 = vadd.f32 %v664, %v733
        %vm735 = vcmask 516096
        %736 = vst.msk [vmem:[#allocation4] sm:$0x1] %vm735, %v734
        // Predicated region
        $region33: #{tpu_custom_call.1} parent=27 // pred_check
          %p737 = pneg %p107
        $region34: #{tpu_custom_call.1} parent=27 // pred_check_branch
          %739 = sbr.rel (%p737) target = $region36
        $region35: #{tpu_custom_call.1} parent=27 // pred_region
          %s741 = ssub.s32 1024, 1024
          %742 = vsyncadd [#allocation3], %s741
          %s743 = smul.addr %s21, 8
          %s744 = smul.addr %s743, 128
          %s745 = scalar_lea.hbm %s2, %s744
          %s746 = sshll.u32 [#allocation2], 4
          %s747 = int_to_ptr.vmem [resolvable:$true] %s746
          %752 = dma.vmem_to_hbm [thread:$0]  %s747, 1024, %s745, [#allocation3], 128, 128, 8
        $region36: #{tpu_custom_call.1} parent=27 // pred_fallthru
          _
        // Predicated region
        $region37: #{tpu_custom_call.1} parent=27 // pred_check
          %p753 = pneg %p133
        $region38: #{tpu_custom_call.1} parent=27 // pred_check_branch
          %755 = sbr.rel (%p753) target = $region40
        $region39: #{tpu_custom_call.1} parent=27 // pred_region
          %s757 = ssub.s32 16, 16
          %758 = vsyncadd [#allocation5], %s757
          %s759 = smul.addr %s21, 16
          %s760 = scalar_lea.hbm %s3, %s759
          %s762 = sshll.u32 [#allocation4], 4
          %s763 = int_to_ptr.vmem [resolvable:$true] %s762
          %765 = dma.vmem_to_hbm [thread:$0]  %s763, 16, %s760, [#allocation5]
        $region40: #{tpu_custom_call.1} parent=27 // pred_fallthru
          _
        // Predicated region
        $region41: #{tpu_custom_call.1} parent=27 // pred_check
          %p766 = pneg %p107
        $region42: #{tpu_custom_call.1} parent=27 // pred_check_branch
          %768 = sbr.rel (%p766) target = $region44
        $region43: #{tpu_custom_call.1} parent=27 // pred_region
          %769 = dma.done [#allocation3], 1024
        $region44: #{tpu_custom_call.1} parent=27 // pred_fallthru
          _
        // Predicated region
        $region45: #{tpu_custom_call.1} parent=27 // pred_check
          %p770 = pneg %p133
        $region46: #{tpu_custom_call.1} parent=27 // pred_check_branch
          %772 = sbr.rel (%p770) target = $region48
        $region47: #{tpu_custom_call.1} parent=27 // pred_region
          %773 = dma.done [#allocation5], 16
        $region48: #{tpu_custom_call.1} parent=27 // pred_fallthru
          _
      $region28: #{tpu_custom_call.1} parent=5 // pred_fallthru
        _
      %p774 = scmp.le.s32.totalorder 2, %s12
      // Predicated region
      $region49: #{tpu_custom_call.1} parent=5 // pred_check
        %p775 = pneg %p774
      $region50: #{tpu_custom_call.1} parent=5 // pred_check_branch
        %777 = sbr.rel (%p775) target = $region52
      $region51: #{tpu_custom_call.1} parent=5 // pred_region
        %s778 = ssub.s32 %s12, 2
      $region52: #{tpu_custom_call.1} parent=5 // pred_fallthru
        _
    $region6: #{tpu_custom_call.1} parent=1 // loop_footer
      %s16 = sadd.s32 1, %s12
    $region7: #{tpu_custom_call.1} parent=1 // loop_footer_branch
      %11 = sbr.rel target = $region3
    $region8: #{tpu_custom_call.1} parent=1 // loop_exit
      _
    %779 = vsyncpa [#allocation3], 1
    %s780 = scalar_lea.sflag [#allocation3], 1
    %781 = vsyncpa %s780, 1
    %782 = vsyncpa [#allocation5], 1

</llo_original>
